<compile_context>
chip_gen: v7x
topology: tpu7x:2x2x1
jax: 0.10.0
libtpu: 0.0.40
codegen_flags: <defaults>
</compile_context>

<pallas_src>
import functools
import math

import jax
import jax.numpy as jnp
from jax import lax
from jax.experimental import pallas as pl
from jax.experimental.pallas import tpu as pltpu


_NUM_CORE_SLOTS = 2  # per-core partial-sum slots (v7x megacore); harmless elsewhere


def _loss_kernel(lm_ref, o_ref, t_ref, out_ref, *, num_features, valid_rows,
                 tiles_per_slot, tile_rows):
    nf = num_features
    c = pl.program_id(0)              # core / partial-sum slot ("parallel")
    i = pl.program_id(1)              # row-tile within the slot ("arbitrary")

    of = o_ref[...].astype(jnp.float32)          # (TR, L)
    tf = t_ref[...].astype(jnp.float32)          # (TR, L)
    tr, lanes = of.shape

    lm = lm_ref[...]                             # (1, L): 1.0 at label lanes
    pm = 1.0 - lm                                # 1.0 at position lanes

    # Validity of each packed super-row of this tile.  Handles the partial
    # trailing tile and the duplicated (index-clamped) tiles of the per-core
    # split: garbage rows contribute exactly zero.
    row0 = (c * tiles_per_slot + i) * tile_rows
    row_id = row0 + lax.broadcasted_iota(jnp.int32, (tr, lanes), 0)
    valid = row_id < valid_rows                  # (TR, L) bool

    # Relevance: target label (feature 0) exactly 1.  Nonzero only at label
    # lanes of relevant agents.  Padded rows carry label 0 -> excluded.
    relf = jnp.where(tf == 1.0, 1.0, 0.0) * lm   # (TR, L)

    # Shared transcendentals (EUP), one exp / one log1p / one exp per lane.
    e = jnp.exp(-jnp.abs(of))                    # exp(-|x|) in (0, 1]
    bce = jnp.maximum(-of, 0.0) + jnp.log1p(e)   # BCE-with-logits vs target 1
    prob = jnp.exp(-bce)                         # == sigmoid(x), no divide

    # Squared position error (zero at label lanes).
    d = (of - tf) * pm
    d2 = d * d

    # Broadcast w = mask * sigmoid from each agent's label lane across its
    # group of nf lanes.  Computed for both roll-direction conventions and
    # selected with a cheap iota probe (direction-proof).
    w = relf * prob
    lane = lax.broadcasted_iota(jnp.int32, (1, lanes), 1)
    probe = pltpu.roll(lane, shift=1, axis=1)
    expected = jnp.where(lane == 0, lanes - 1, lane - 1)
    fwd = probe == expected                      # all-True iff roll == jnp.roll
    wa = w
    wb = w
    for k in range(1, nf):
        wa = wa + pltpu.roll(w, shift=k, axis=1)
        wb = wb + pltpu.roll(w, shift=lanes - k, axis=1)
    wbc = jnp.where(fwd, wa, wb)                 # (TR, L)

    zero = jnp.zeros_like(of)
    c_cnt = jnp.where(valid, relf, zero)
    c_bce = jnp.where(valid, relf * bce, zero)
    c_pos = jnp.where(valid, wbc * d2, zero)     # un-normalized pos contribution

    upd = jnp.concatenate(
        [jnp.sum(c_cnt, axis=0, keepdims=True),
         jnp.sum(c_bce, axis=0, keepdims=True),
         jnp.sum(c_pos, axis=0, keepdims=True)], axis=0)   # (3, L) partials

    @pl.when(i == 0)
    def _():
        out_ref[...] = jnp.zeros_like(out_ref)

    out_ref[...] += upd[None]


def class_position_loss(outputs, targets, class_weight=1.0, position_weight=100.0,
                        target_block_bytes=512 * 1024):
    """outputs, targets: (B, A, F) with F >= 2. Returns (total_loss, info_dict)."""
    B, A, NF = outputs.shape
    assert targets.shape == outputs.shape and NF >= 2
    M = B * A

    # Lane-dense packing: R consecutive agent rows per packed row, L lanes.
    L = (128 // math.gcd(NF, 128)) * NF          # smallest common multiple of NF, 128
    R = L // NF

    o2 = outputs.reshape(M, NF)                  # no astype: cast happens per-tile
    t2 = targets.reshape(M, NF)
    if M % R != 0:
        # Only the ragged case pays for a (small) zero pad; padded labels are 0.
        pad = R - (M % R)
        o2 = jnp.pad(o2, ((0, pad), (0, 0)))
        t2 = jnp.pad(t2, ((0, pad), (0, 0)))
    Msup = o2.shape[0] // R
    o2 = o2.reshape(Msup, L)                     # contiguous bitcast
    t2 = t2.reshape(Msup, L)

    # ~0.5 MiB per input block per step; fits every generation's scoped VMEM
    # with double buffering + in-kernel f32 temporaries.
    itemsize = o2.dtype.itemsize
    tile_rows = max(8, (target_block_bytes // (L * itemsize)) // 8 * 8)
    if tile_rows > Msup:
        tile_rows = Msup                         # full-dim block (always legal)
    num_tiles = pl.cdiv(Msup, tile_rows)
    tiles_per_slot = pl.cdiv(num_tiles, _NUM_CORE_SLOTS)

    lane_mask = (jnp.arange(L, dtype=jnp.int32) % NF == 0).astype(jnp.float32)[None, :]

    kernel = functools.partial(
        _loss_kernel, num_features=NF, valid_rows=Msup,
        tiles_per_slot=tiles_per_slot, tile_rows=tile_rows)

    def data_map(c, i):
        # Clamp duplicated tiles of the per-core split to a valid block index;
        # their contribution is zeroed by the in-kernel validity mask.
        return (jnp.minimum(c * tiles_per_slot + i, num_tiles - 1), 0)

    partials = pl.pallas_call(
        kernel,
        out_shape=jax.ShapeDtypeStruct((_NUM_CORE_SLOTS, 3, L), jnp.float32),
        grid_spec=pltpu.PrefetchScalarGridSpec(
            num_scalar_prefetch=0,
            grid=(_NUM_CORE_SLOTS, tiles_per_slot),
            in_specs=[
                pl.BlockSpec((1, L), lambda c, i: (0, 0)),
                pl.BlockSpec((tile_rows, L), data_map),
                pl.BlockSpec((tile_rows, L), data_map),
            ],
            out_specs=pl.BlockSpec((1, 3, L), lambda c, i: (c, 0, 0)),
        ),
        compiler_params=pltpu.CompilerParams(
            dimension_semantics=("parallel", "arbitrary")),
    )(lane_mask, o2, t2)

    sums = jnp.sum(partials, axis=(0, 2))        # (3,): count, sum_bce, sum_pos_raw
    count, s_bce, s_pos = sums[0], sums[1], sums[2]
    denom = jnp.maximum(count, 1.0)
    has_any = count > 0.0
    class_loss = jnp.where(has_any, s_bce / denom, 0.0)
    weighted_position_loss = jnp.where(
        has_any, s_pos / (denom * float(NF - 1)), 0.0)   # 1/(F-1) folded here

    total_loss = class_weight * class_loss + position_weight * weighted_position_loss
    info = {
        "class_loss": class_weight * class_loss,
        "position_loss": position_weight * weighted_position_loss,
    }
    return total_loss, info


def _reference(outputs, targets, class_weight=1.0, position_weight=100.0):
    """Pure-JAX reference mirroring the PyTorch forward."""
    labels = targets[:, :, 0]
    maskf = (labels == 1.0).astype(jnp.float32)
    cnt = jnp.sum(maskf)
    x = outputs[:, :, 0]
    bce = jnp.maximum(x, 0.0) - x * labels + jnp.log1p(jnp.exp(-jnp.abs(x)))
    class_loss = jnp.where(cnt > 0, jnp.sum(bce * maskf) / jnp.maximum(cnt, 1.0), 0.0)
    prob = jax.nn.sigmoid(x)
    mse = jnp.mean((outputs[:, :, 1:] - targets[:, :, 1:]) ** 2, axis=-1)
    wpos = jnp.where(cnt > 0, jnp.sum(mse * prob * maskf) / jnp.maximum(cnt, 1.0), 0.0)
    return class_weight * class_loss + position_weight * wpos


def _make_inputs(key, B, A, F, label_p=0.5):
    k1, k2, k3 = jax.random.split(key, 3)
    outputs = jax.random.normal(k1, (B, A, F), dtype=jnp.float32)
    labels = (jax.random.uniform(k2, (B, A)) > (1.0 - label_p)).astype(jnp.float32)
    positions = jax.random.normal(k3, (B, A, F - 1), dtype=jnp.float32)
    targets = jnp.concatenate([labels[..., None], positions], axis=-1)
    return outputs, targets


if __name__ == "__main__":
    key = jax.random.PRNGKey(0)
    k_a, k_b, k_c = jax.random.split(key, 3)

    # 1) Small shape from the module spec: batch=2, max_agents=8, num_features=4.
    outputs, targets = _make_inputs(k_a, 2, 8, 4)
    total, info = class_position_loss(outputs, targets)
    total = jax.block_until_ready(total)
    ref = jax.block_until_ready(_reference(outputs, targets))
    assert jnp.allclose(total, ref, rtol=1e-5, atol=1e-5), (total, ref)
    _ = {k: float(v) for k, v in info.items()}  # .item()-style floats

    # 2) Ragged multi-tile case exercising both core slots and partial blocks.
    outputs2, targets2 = _make_inputs(k_b, 4, 75, 4)
    total2, _ = class_position_loss(outputs2, targets2, target_block_bytes=4096)
    total2 = jax.block_until_ready(total2)
    ref2 = jax.block_until_ready(_reference(outputs2, targets2))
    assert jnp.allclose(total2, ref2, rtol=1e-5, atol=1e-5), (total2, ref2)

    # 3) No relevant agents -> both losses are exactly zero.
    outputs3, targets3 = _make_inputs(k_c, 2, 8, 4, label_p=0.0)
    total3, _ = class_position_loss(outputs3, targets3)
    total3 = jax.block_until_ready(total3)
    assert jnp.allclose(total3, 0.0, atol=1e-6), total3

    print("KERNEL_OK")
</pallas_src>

<mosaic_0001>
module attributes {stable_mosaic.version = 11 : i64} {
  func.func @_loss_kernel(%arg0: i32, %arg1: i32, %arg2: memref<1x128xf32, #tpu.memory_space<vmem>>, %arg3: memref<1x128xf32, #tpu.memory_space<vmem>>, %arg4: memref<1x128xf32, #tpu.memory_space<vmem>>, %arg5: memref<1x3x128xf32, #tpu.memory_space<vmem>>) attributes {dimension_semantics = [#tpu.dimension_semantics<parallel>, #tpu.dimension_semantics<arbitrary>], iteration_bounds = array<i64: 2, 1>, scalar_prefetch = 0 : i64, scratch_operands = 0 : i64, tpu.core_type = #tpu.core_type<tc>, window_params = [{pipeline_mode = #tpu.pipeline_mode<synchronous>, transform_indices = @transform_0, window_bounds = array<i64: 1, 128>}, {transform_indices = @transform_1, window_bounds = array<i64: 1, 128>}, {transform_indices = @transform_2, window_bounds = array<i64: 1, 128>}, {transform_indices = @transform_3, window_bounds = array<i64: 1, 3, 128>}]} {
    %c0 = arith.constant 0 : index
    %c0_0 = arith.constant 0 : index
    %0 = vector.load %arg3[%c0, %c0_0] : memref<1x128xf32, #tpu.memory_space<vmem>>, vector<1x128xf32>
    %c0_1 = arith.constant 0 : index
    %c0_2 = arith.constant 0 : index
    %1 = vector.load %arg4[%c0_1, %c0_2] : memref<1x128xf32, #tpu.memory_space<vmem>>, vector<1x128xf32>
    %c0_3 = arith.constant 0 : index
    %c0_4 = arith.constant 0 : index
    %2 = vector.load %arg2[%c0_3, %c0_4] : memref<1x128xf32, #tpu.memory_space<vmem>>, vector<1x128xf32>
    %cst = arith.constant 1.000000e+00 : f32
    %3 = vector.broadcast %cst : f32 to vector<1x128xf32>
    %4 = arith.subf %3, %2 : vector<1x128xf32>
    %c1_i32 = arith.constant 1 : i32
    %5 = arith.muli %arg0, %c1_i32 : i32
    %6 = arith.addi %5, %arg1 : i32
    %c1_i32_5 = arith.constant 1 : i32
    %7 = arith.muli %6, %c1_i32_5 : i32
    %8 = tpu.iota {dimensions = array<i32: 0>} : vector<1x128xi32>
    %9 = vector.broadcast %7 : i32 to vector<1x128xi32>
    %10 = arith.addi %9, %8 : vector<1x128xi32>
    %c1_i32_6 = arith.constant 1 : i32
    %11 = vector.broadcast %c1_i32_6 : i32 to vector<1x128xi32>
    %12 = arith.cmpi slt, %10, %11 : vector<1x128xi32>
    %cst_7 = arith.constant 1.000000e+00 : f32
    %13 = vector.broadcast %cst_7 : f32 to vector<1x128xf32>
    %14 = arith.cmpf oeq, %1, %13 : vector<1x128xf32>
    %cst_8 = arith.constant 1.000000e+00 : f32
    %cst_9 = arith.constant 0.000000e+00 : f32
    %15 = vector.broadcast %cst_8 : f32 to vector<1x128xf32>
    %16 = vector.broadcast %cst_9 : f32 to vector<1x128xf32>
    %17 = arith.select %14, %15, %16 : vector<1x128xi1>, vector<1x128xf32>
    %18 = arith.mulf %17, %2 : vector<1x128xf32>
    %19 = math.absf %0 : vector<1x128xf32>
    %cst_10 = arith.constant 0.000000e+00 : f32
    %20 = vector.broadcast %cst_10 : f32 to vector<1x128xf32>
    %21 = arith.subf %20, %19 : vector<1x128xf32>
    %22 = math.exp %21 : vector<1x128xf32>
    %cst_11 = arith.constant 0.000000e+00 : f32
    %23 = vector.broadcast %cst_11 : f32 to vector<1x128xf32>
    %24 = arith.subf %23, %0 : vector<1x128xf32>
    %cst_12 = arith.constant 0.000000e+00 : f32
    %25 = vector.broadcast %cst_12 : f32 to vector<1x128xf32>
    %26 = arith.maximumf %24, %25 : vector<1x128xf32>
    %27 = math.log1p %22 : vector<1x128xf32>
    %28 = arith.addf %26, %27 : vector<1x128xf32>
    %cst_13 = arith.constant 0.000000e+00 : f32
    %29 = vector.broadcast %cst_13 : f32 to vector<1x128xf32>
    %30 = arith.subf %29, %28 : vector<1x128xf32>
    %31 = math.exp %30 : vector<1x128xf32>
    %32 = arith.subf %0, %1 : vector<1x128xf32>
    %33 = arith.mulf %32, %4 : vector<1x128xf32>
    %34 = arith.mulf %33, %33 : vector<1x128xf32>
    %35 = arith.mulf %18, %31 : vector<1x128xf32>
    %36 = tpu.iota {dimensions = array<i32: 1>} : vector<1x128xi32>
    %c1_i32_14 = arith.constant 1 : i32
    %37 = tpu.dynamic_rotate %36 by %c1_i32_14 dim 1 : vector<1x128xi32>, i32 -> vector<1x128xi32>
    %c0_i32 = arith.constant 0 : i32
    %38 = vector.broadcast %c0_i32 : i32 to vector<1x128xi32>
    %39 = arith.cmpi eq, %36, %38 : vector<1x128xi32>
    %c1_i32_15 = arith.constant 1 : i32
    %40 = vector.broadcast %c1_i32_15 : i32 to vector<1x128xi32>
    %41 = arith.subi %36, %40 : vector<1x128xi32>
    %c127_i32 = arith.constant 127 : i32
    %42 = vector.broadcast %c127_i32 : i32 to vector<1x128xi32>
    %43 = arith.select %39, %42, %41 : vector<1x128xi1>, vector<1x128xi32>
    %44 = arith.cmpi eq, %37, %43 : vector<1x128xi32>
    %c1_i32_16 = arith.constant 1 : i32
    %45 = tpu.dynamic_rotate %35 by %c1_i32_16 dim 1 : vector<1x128xf32>, i32 -> vector<1x128xf32>
    %46 = arith.addf %35, %45 : vector<1x128xf32>
    %c127_i32_17 = arith.constant 127 : i32
    %47 = tpu.dynamic_rotate %35 by %c127_i32_17 dim 1 : vector<1x128xf32>, i32 -> vector<1x128xf32>
    %48 = arith.addf %35, %47 : vector<1x128xf32>
    %c2_i32 = arith.constant 2 : i32
    %49 = tpu.dynamic_rotate %35 by %c2_i32 dim 1 : vector<1x128xf32>, i32 -> vector<1x128xf32>
    %50 = arith.addf %46, %49 : vector<1x128xf32>
    %c126_i32 = arith.constant 126 : i32
    %51 = tpu.dynamic_rotate %35 by %c126_i32 dim 1 : vector<1x128xf32>, i32 -> vector<1x128xf32>
    %52 = arith.addf %48, %51 : vector<1x128xf32>
    %c3_i32 = arith.constant 3 : i32
    %53 = tpu.dynamic_rotate %35 by %c3_i32 dim 1 : vector<1x128xf32>, i32 -> vector<1x128xf32>
    %54 = arith.addf %50, %53 : vector<1x128xf32>
    %c125_i32 = arith.constant 125 : i32
    %55 = tpu.dynamic_rotate %35 by %c125_i32 dim 1 : vector<1x128xf32>, i32 -> vector<1x128xf32>
    %56 = arith.addf %52, %55 : vector<1x128xf32>
    %57 = arith.select %44, %54, %56 : vector<1x128xi1>, vector<1x128xf32>
    %cst_18 = arith.constant 0.000000e+00 : f32
    %58 = vector.broadcast %cst_18 : f32 to vector<1x128xf32>
    %59 = arith.select %12, %18, %58 : vector<1x128xi1>, vector<1x128xf32>
    %60 = arith.mulf %18, %28 : vector<1x128xf32>
    %61 = arith.select %12, %60, %58 : vector<1x128xi1>, vector<1x128xf32>
    %62 = arith.mulf %57, %34 : vector<1x128xf32>
    %63 = arith.select %12, %62, %58 : vector<1x128xi1>, vector<1x128xf32>
    %cst_19 = arith.constant dense<0.000000e+00> : vector<128xf32>
    %64 = vector.multi_reduction <add>, %59, %cst_19 [0] : vector<1x128xf32> to vector<128xf32>
    %65 = vector.shape_cast %64 : vector<128xf32> to vector<1x128xf32>
    %cst_20 = arith.constant dense<0.000000e+00> : vector<128xf32>
    %66 = vector.multi_reduction <add>, %61, %cst_20 [0] : vector<1x128xf32> to vector<128xf32>
    %67 = vector.shape_cast %66 : vector<128xf32> to vector<1x128xf32>
    %cst_21 = arith.constant dense<0.000000e+00> : vector<128xf32>
    %68 = vector.multi_reduction <add>, %63, %cst_21 [0] : vector<1x128xf32> to vector<128xf32>
    %69 = vector.shape_cast %68 : vector<128xf32> to vector<1x128xf32>
    %70 = tpu.concatenate %65, %67, %69 in 0 : vector<1x128xf32>, vector<1x128xf32>, vector<1x128xf32> -> vector<3x128xf32>
    %c0_i32_22 = arith.constant 0 : i32
    %71 = arith.cmpi eq, %arg1, %c0_i32_22 : i32
    %72 = arith.extui %71 : i1 to i32
    %c0_i32_23 = arith.constant 0 : i32
    %73 = arith.cmpi ne, %72, %c0_i32_23 : i32
    scf.if %73 {
      %cst_30 = arith.constant 0.000000e+00 : f32
      %78 = vector.broadcast %cst_30 : f32 to vector<1x3x128xf32>
      %c0_31 = arith.constant 0 : index
      %c0_32 = arith.constant 0 : index
      %c0_33 = arith.constant 0 : index
      %79 = vector.load %arg5[%c0_31, %c0_32, %c0_33] : memref<1x3x128xf32, #tpu.memory_space<vmem>>, vector<1x3x128xf32>
      tpu.vector_store %arg5[%c0_31, %c0_32, %c0_33], %78 {strides = array<i32>} : memref<1x3x128xf32, #tpu.memory_space<vmem>>, vector<1x3x128xf32>,
    } else {
    }
    %c0_24 = arith.constant 0 : index
    %c0_25 = arith.constant 0 : index
    %c0_26 = arith.constant 0 : index
    %74 = vector.load %arg5[%c0_24, %c0_25, %c0_26] : memref<1x3x128xf32, #tpu.memory_space<vmem>>, vector<1x3x128xf32>
    %75 = vector.shape_cast %70 : vector<3x128xf32> to vector<1x3x128xf32>
    %76 = arith.addf %74, %75 : vector<1x3x128xf32>
    %c0_27 = arith.constant 0 : index
    %c0_28 = arith.constant 0 : index
    %c0_29 = arith.constant 0 : index
    %77 = vector.load %arg5[%c0_27, %c0_28, %c0_29] : memref<1x3x128xf32, #tpu.memory_space<vmem>>, vector<1x3x128xf32>
    tpu.vector_store %arg5[%c0_27, %c0_28, %c0_29], %76 {strides = array<i32>} : memref<1x3x128xf32, #tpu.memory_space<vmem>>, vector<1x3x128xf32>,
    return
  }
  func.func @transform_0(%arg0: i32, %arg1: i32) -> (i32, i32) {
    %c0_i32 = arith.constant 0 : i32
    %c0_i32_0 = arith.constant 0 : i32
    %c0_i32_1 = arith.constant 0 : i32
    return %c0_i32, %c0_i32_0 : i32, i32
  }
  func.func @transform_1(%arg0: i32, %arg1: i32) -> (i32, i32) {
    %c1_i32 = arith.constant 1 : i32
    %0 = arith.muli %arg0, %c1_i32 : i32
    %1 = arith.addi %0, %arg1 : i32
    %c0_i32 = arith.constant 0 : i32
    %2 = arith.minsi %1, %c0_i32 : i32
    %c0_i32_0 = arith.constant 0 : i32
    %c0_i32_1 = arith.constant 0 : i32
    return %2, %c0_i32_0 : i32, i32
  }
  func.func @transform_2(%arg0: i32, %arg1: i32) -> (i32, i32) {
    %c1_i32 = arith.constant 1 : i32
    %0 = arith.muli %arg0, %c1_i32 : i32
    %1 = arith.addi %0, %arg1 : i32
    %c0_i32 = arith.constant 0 : i32
    %2 = arith.minsi %1, %c0_i32 : i32
    %c0_i32_0 = arith.constant 0 : i32
    %c0_i32_1 = arith.constant 0 : i32
    return %2, %c0_i32_0 : i32, i32
  }
  func.func @transform_3(%arg0: i32, %arg1: i32) -> (i32, i32, i32) {
    %c0_i32 = arith.constant 0 : i32
    %c0_i32_0 = arith.constant 0 : i32
    %c0_i32_1 = arith.constant 0 : i32
    return %arg0, %c0_i32, %c0_i32_0 : i32, i32, i32
  }
}

</mosaic_0001>

<llo_original>
// kernel: tpu_custom_call.1
$region0: #{tpu_custom_call.1}
  #allocation0 [shape = 'u32[]', space=smem, size = 0x4, offset = 0x4, fixed_abs, tag = 'smem constant byte address 0x4 - core index']
  #allocation1 [shape = 'u32[144,128]{1,0:T(1,128)}', space=vmem, size = 0x12000, scoped, tag = 'internal scratch']
  %s0 = inlined_call_operand.hbm [shape: f32[1,128], index: 0, kind: input, shape index: {}]
  %s1 = inlined_call_operand.vmem [shape: f32[1,128], index: 1, kind: input, shape index: {}]
  %s2 = inlined_call_operand.vmem [shape: f32[1,128], index: 2, kind: input, shape index: {}]
  %s3 = inlined_call_operand.vmem [shape: f32[2,3,128], index: 3, kind: output, shape index: {}]
  %s4 = sld [smem:[#allocation0]]
  $region53: #{tpu_custom_call.1} parent=0
    _
  %s6 = ssub.s32 1, %s4
  %s7 = scalar_select 0, %s6, %s4
  $region1: #{tpu_custom_call.1} parent=0
    #allocation2 [shape = 'u8[512]{0}', space=vmem, size = 0x400, scoped, tag = 'input window, operand 0, single buffered']
    #allocation3 [shape = 's32[2]{0}', space=sflag, size = 0x8, scoped, tag = 'scoped memory for tpu_custom_call.1']
    %8 = vsyncpa [#allocation3], 0
    loop: start=0, step=1, limit=4
    $region2: #{tpu_custom_call.1} parent=1 // loop_pre_header
      _
    $region3: #{tpu_custom_call.1} parent=1 // loop_header
      %s10 = sphi 0, %s14
      %p11 = scmp.ge.s32.totalorder %s10, 4
      %s17 = sphi 0, %s29
      %s18 = sphi 0, %s25
      %s19 = sphi 0, %s17
      %s20 = sphi 0, %s18
      %s21 = sphi 0, %s19
      %s22 = sphi 0, %s20
      %s30 = sphi 0, %s30
      %s32 = sphi 0, %s30
      %s33 = sphi 0, %s32
      %s47 = sphi 0, %s33
      %s59 = sphi 0, %s61
      %s62 = sphi 0, %s59
      %s63 = sphi 0, %s62
      %s79 = sphi 0, %s63
      %s91 = sphi 0, %s93
      %s94 = sphi 0, %s91
      %s95 = sphi 0, %s94
      %s111 = sphi 0, %s95
      %s117 = sphi 0, %s119
      %s120 = sphi 0, %s117
      %s121 = sphi 0, %s120
      %s137 = sphi 0, %s121
    $region4: #{tpu_custom_call.1} parent=1 // loop_header_branch
      %13 = sbr.rel (%p11) target = $region8
    $region5: #{tpu_custom_call.1} parent=1 // loop_body
      %s15 = ssub.s32 %s10, 1
      %s16 = ssub.s32 %s10, 2
      %s23 = sadd.s32 1, %s18
      %p24 = scmp.ge.s32.totalorder %s23, 1
      %s25 = scalar_select %p24, 0, %s23
      %s26 = sadd.s32 1, %s17
      %s27 = scalar_select %p24, %s26, %s17
      %p28 = scmp.ge.s32.totalorder %s27, 2
      %s29 = scalar_select %p28, 0, %s27
      %s31 = sadd.s32 %s30, 1
      %p34 = scmp.eq.s32.totalorder %s10, 1
      %p35 = scmp.ne.s32.totalorder %s30, %s32
      %p36 = scmp.eq.s32.totalorder %s10, 0
      %p37 = por %p35, %p36
      %p38 = scmp.ne.s32.totalorder %s30, %s32
      %p39 = scmp.eq.s32.totalorder %s15, 1
      %p40 = por %p38, %p39
      %p41 = scmp.ne.s32.totalorder %s32, %s33
      %p42 = scmp.eq.s32.totalorder %s15, 0
      %p43 = por %p41, %p42
      %p44 = scmp.ne.s32.totalorder %s32, %s33
      %p45 = scmp.eq.s32.totalorder %s16, 1
      %p46 = por %p44, %p45
      %p48 = scmp.ne.s32.totalorder %s33, %s47
      %p49 = scmp.eq.s32.totalorder %s16, 0
      %p50 = por %p48, %p49
      %s51 = sadd.s32 %s17, %s18
      %p52 = scmp.lt.s32.totalorder %s51, 0
      %s53 = scalar_select %p52, %s51, 0
      %s54 = sadd.s32 %s29, %s25
      %p55 = scmp.lt.s32.totalorder %s54, 0
      %s56 = scalar_select %p55, %s54, 0
      %s57 = ssub.s32 %s53, %s56
      %p58 = scmp.eq.s32.totalorder %s57, 0
      %s60 = sadd.s32 %s59, 1
      %s61 = scalar_select %p58, %s59, %s60
      %p64 = pneg %p58
      %p65 = scmp.eq.s32.totalorder %s10, 1
      %p66 = por %p64, %p65
      %p67 = scmp.ne.s32.totalorder %s59, %s62
      %p68 = scmp.eq.s32.totalorder %s10, 0
      %p69 = por %p67, %p68
      %p70 = scmp.ne.s32.totalorder %s59, %s62
      %p71 = scmp.eq.s32.totalorder %s15, 1
      %p72 = por %p70, %p71
      %p73 = scmp.ne.s32.totalorder %s62, %s63
      %p74 = scmp.eq.s32.totalorder %s15, 0
      %p75 = por %p73, %p74
      %p76 = scmp.ne.s32.totalorder %s62, %s63
      %p77 = scmp.eq.s32.totalorder %s16, 1
      %p78 = por %p76, %p77
      %p80 = scmp.ne.s32.totalorder %s63, %s79
      %p81 = scmp.eq.s32.totalorder %s16, 0
      %p82 = por %p80, %p81
      %s83 = sadd.s32 %s17, %s18
      %p84 = scmp.lt.s32.totalorder %s83, 0
      %s85 = scalar_select %p84, %s83, 0
      %s86 = sadd.s32 %s29, %s25
      %p87 = scmp.lt.s32.totalorder %s86, 0
      %s88 = scalar_select %p87, %s86, 0
      %s89 = ssub.s32 %s85, %s88
      %p90 = scmp.eq.s32.totalorder %s89, 0
      %s92 = sadd.s32 %s91, 1
      %s93 = scalar_select %p90, %s91, %s92
      %p96 = pneg %p90
      %p97 = scmp.eq.s32.totalorder %s10, 1
      %p98 = por %p96, %p97
      %p99 = scmp.ne.s32.totalorder %s91, %s94
      %p100 = scmp.eq.s32.totalorder %s10, 0
      %p101 = por %p99, %p100
      %p102 = scmp.ne.s32.totalorder %s91, %s94
      %p103 = scmp.eq.s32.totalorder %s15, 1
      %p104 = por %p102, %p103
      %p105 = scmp.ne.s32.totalorder %s94, %s95
      %p106 = scmp.eq.s32.totalorder %s15, 0
      %p107 = por %p105, %p106
      %p108 = scmp.ne.s32.totalorder %s94, %s95
      %p109 = scmp.eq.s32.totalorder %s16, 1
      %p110 = por %p108, %p109
      %p112 = scmp.ne.s32.totalorder %s95, %s111
      %p113 = scmp.eq.s32.totalorder %s16, 0
      %p114 = por %p112, %p113
      %s115 = ssub.s32 %s17, %s29
      %p116 = scmp.eq.s32.totalorder %s115, 0
      %s118 = sadd.s32 %s117, 1
      %s119 = scalar_select %p116, %s117, %s118
      %p122 = pneg %p116
      %p123 = scmp.eq.s32.totalorder %s10, 1
      %p124 = por %p122, %p123
      %p125 = scmp.ne.s32.totalorder %s117, %s120
      %p126 = scmp.eq.s32.totalorder %s10, 0
      %p127 = por %p125, %p126
      %p128 = scmp.ne.s32.totalorder %s117, %s120
      %p129 = scmp.eq.s32.totalorder %s15, 1
      %p130 = por %p128, %p129
      %p131 = scmp.ne.s32.totalorder %s120, %s121
      %p132 = scmp.eq.s32.totalorder %s15, 0
      %p133 = por %p131, %p132
      %p134 = scmp.ne.s32.totalorder %s120, %s121
      %p135 = scmp.eq.s32.totalorder %s16, 1
      %p136 = por %p134, %p135
      %p138 = scmp.ne.s32.totalorder %s121, %s137
      %p139 = scmp.eq.s32.totalorder %s16, 0
      %p140 = por %p138, %p139
      %p141 = scmp.le.s32.totalorder 1, %s10
      %p142 = scmp.lt.s32.totalorder %s10, 3
      %p143 = pnand %p141, %p142
      %p144 = pneg %p143
      // Predicated region
      $region9: #{tpu_custom_call.1} parent=5 // pred_check
        _
      $region10: #{tpu_custom_call.1} parent=5 // pred_check_branch
        %146 = sbr.rel (%p143) target = $region12
      $region11: #{tpu_custom_call.1} parent=5 // pred_region
        %s147 = ssub.s32 %s10, 1
        // Predicated region
        $region13: #{tpu_custom_call.1} parent=11 // pred_check
          %p148 = pneg %p43
        $region14: #{tpu_custom_call.1} parent=11 // pred_check_branch
          %150 = sbr.rel (%p148) target = $region16
        $region15: #{tpu_custom_call.1} parent=11 // pred_region
          %s152 = ssub.s32 16, 16
          %153 = vsyncadd [#allocation3], %s152
          %s155 = sshll.u32 [#allocation2], 4
          %s156 = int_to_ptr.vmem [resolvable:$true] %s155
          %158 = dma.hbm_to_vmem [thread:$0]  %s0, 16, %s156, [#allocation3]
        $region16: #{tpu_custom_call.1} parent=11 // pred_fallthru
          _
      $region12: #{tpu_custom_call.1} parent=5 // pred_fallthru
        _
      %p159 = scmp.lt.s32.totalorder %s10, 2
      // Predicated region
      $region17: #{tpu_custom_call.1} parent=5 // pred_check
        %p160 = pneg %p159
      $region18: #{tpu_custom_call.1} parent=5 // pred_check_branch
        %162 = sbr.rel (%p160) target = $region20
      $region19: #{tpu_custom_call.1} parent=5 // pred_region
        // Predicated region
        $region21: #{tpu_custom_call.1} parent=19 // pred_check
          %p163 = pneg %p69
        $region22: #{tpu_custom_call.1} parent=19 // pred_check_branch
          %165 = sbr.rel (%p163) target = $region24
        $region23: #{tpu_custom_call.1} parent=19 // pred_region
          %s166 = sadd.s32 %s17, %s18
          %p167 = scmp.lt.s32.totalorder %s166, 0
          %s168 = scalar_select %p167, %s166, 0
          %p169 = scmp.lt.s32.totalorder %s168, 0
          %s170 = scalar_select %p169, %s168, 0
          %s171 = scalar_lea.vmem %s1, %s170
          %s172 = sadd.s32 %s17, %s18
          %p173 = scmp.lt.s32.totalorder %s172, 0
          %s174 = scalar_select %p173, %s172, 0
        $region24: #{tpu_custom_call.1} parent=19 // pred_fallthru
          _
        // Predicated region
        $region25: #{tpu_custom_call.1} parent=19 // pred_check
          %p175 = pneg %p101
        $region26: #{tpu_custom_call.1} parent=19 // pred_check_branch
          %177 = sbr.rel (%p175) target = $region28
        $region27: #{tpu_custom_call.1} parent=19 // pred_region
          %s178 = sadd.s32 %s17, %s18
          %p179 = scmp.lt.s32.totalorder %s178, 0
          %s180 = scalar_select %p179, %s178, 0
          %p181 = scmp.lt.s32.totalorder %s180, 0
          %s182 = scalar_select %p181, %s180, 0
          %s183 = scalar_lea.vmem %s2, %s182
          %s184 = sadd.s32 %s17, %s18
          %p185 = scmp.lt.s32.totalorder %s184, 0
          %s186 = scalar_select %p185, %s184, 0
        $region28: #{tpu_custom_call.1} parent=19 // pred_fallthru
          _
      $region20: #{tpu_custom_call.1} parent=5 // pred_fallthru
        _
      %p187 = scmp.le.s32.totalorder 1, %s10
      %p188 = scmp.lt.s32.totalorder %s10, 3
      %p189 = pnand %p187, %p188
      %p190 = pneg %p189
      // Predicated region
      $region29: #{tpu_custom_call.1} parent=5 // pred_check
        _
      $region30: #{tpu_custom_call.1} parent=5 // pred_check_branch
        %192 = sbr.rel (%p189) target = $region32
      $region31: #{tpu_custom_call.1} parent=5 // pred_region
        %s193 = ssub.s32 %s10, 1
        // Predicated region
        $region33: #{tpu_custom_call.1} parent=31 // pred_check
          %p194 = pneg %p43
        $region34: #{tpu_custom_call.1} parent=31 // pred_check_branch
          %196 = sbr.rel (%p194) target = $region36
        $region35: #{tpu_custom_call.1} parent=31 // pred_region
          %197 = dma.done [#allocation3], 16
        $region36: #{tpu_custom_call.1} parent=31 // pred_fallthru
          _
        %p198 = pneg %p43
        %p199 = pneg %p40
        %s200 = sadd.s32 %s19, %s20
        %p201 = scmp.lt.s32.totalorder %s200, 0
        %s202 = scalar_select %p201, %s200, 0
        %p203 = scmp.lt.s32.totalorder %s202, 0
        %s204 = scalar_select %p203, %s202, 0
        %s205 = scalar_lea.vmem %s1, %s204
        %p206 = pneg %p75
        %p207 = pneg %p72
        %s208 = sadd.s32 %s19, %s20
        %p209 = scmp.lt.s32.totalorder %s208, 0
        %s210 = scalar_select %p209, %s208, 0
        %p211 = scmp.lt.s32.totalorder %s210, 0
        %s212 = scalar_select %p211, %s210, 0
        %s213 = scalar_lea.vmem %s2, %s212
        %p214 = pneg %p107
        %p215 = pneg %p104
        %p216 = pneg %p133
        %p217 = pneg %p130
        %p218 = scmp.lt.s32.totalorder %s19, 1
        %s219 = scalar_select %p218, %s19, 1
        %s220 = smul.addr %s219, 4
        %s221 = scalar_lea.vmem %s3, %s220
        %s222 = sadd.s32 %s19, %s20
        %p223 = scmp.lt.s32.totalorder %s222, 0
        %s224 = scalar_select %p223, %s222, 0
        %p225 = scmp.lt.s32.totalorder %s224, 0
        %s226 = scalar_select %p225, %s224, 0
        %s227 = scalar_lea.vmem %s1, %s226
        %s228 = sadd.s32 %s19, %s20
        %p229 = scmp.lt.s32.totalorder %s228, 0
        %s230 = scalar_select %p229, %s228, 0
        %s231 = sadd.s32 %s19, %s20
        %p232 = scmp.lt.s32.totalorder %s231, 0
        %s233 = scalar_select %p232, %s231, 0
        %p234 = scmp.lt.s32.totalorder %s233, 0
        %s235 = scalar_select %p234, %s233, 0
        %s236 = scalar_lea.vmem %s2, %s235
        %s237 = sadd.s32 %s19, %s20
        %p238 = scmp.lt.s32.totalorder %s237, 0
        %s239 = scalar_select %p238, %s237, 0
        %p240 = scmp.lt.s32.totalorder %s19, 1
        %s241 = scalar_select %p240, %s19, 1
        %s242 = smul.addr %s241, 4
        %s243 = scalar_lea.vmem %s3, %s242
        %v244 = vld [vmem:[%s227] sm:$0x1]
        %v245 = vld [vmem:[%s236] sm:$0x1]
        %v246 = vld [vmem:[#allocation2] sm:$0x1]
        %v247 = vsub.f32 1.0, %v246
        %s248 = sadd.s32 %s19, %s20
        %v249 = vlaneseq
        %v250 = vshrl.u32 %v249, 7
        %v251 = vstv %s248
        %v252 = vadd.s32 %v251, %v250
        %vm253 = vcmp.lt.s32.totalorder %v252, 1
        %vm254 = vcmp.eq.f32.partialorder %v245, 1.0
        %v255 = vsel %vm254, 1.0, 0.0
        %v256 = vmul.f32 %v255, %v246
        %v257 = vand.u32 2147483647, %v244
        %v258 = vsub.f32 0.0, %v257
        %v259 = vmul.f32 %v258, 1.442695
        %v260 = vpow.pop %v259
        %v261 = vsub.f32 0.0, %v244
        %v262 = vmax.f32 %v261, 0.0
        %v263 = vadd.f32 %v260, 1.0
        %v264 = vlog2.pop %v263
        %v265 = vmul.f32 %v264, 0.6931472
        %v266 = vmul.f32 -0.5, %v260
        %v267 = vadd.f32 %v266, 1.0
        %v268 = vmul.f32 %v267, %v260
        %v269 = vand.u32 2147483647, %v260
        %vm270 = vcmp.lt.f32.partialorder %v269, 0.0004427343
        %v271 = vsel %vm270, %v268, %v265
        %v272 = vadd.f32 %v262, %v271
        %v273 = vsub.f32 0.0, %v272
        %v274 = vmul.f32 %v273, 1.442695
        %v275 = vpow.pop %v274
        %v276 = vsub.f32 %v244, %v245
        %v277 = vmul.f32 %v276, %v247
        %v278 = vmul.f32 %v277, %v277
        %v279 = vmul.f32 %v256, %v275
        %v280 = vlaneseq
        %v281 = vand.u32 %v280, 127
        %282 = vrot.lane.b32.xlu0 %v281, 1
        %v283 = vpop.permute.xlu0 %282
        %vm284 = vcmp.eq.s32.totalorder %v281, 0
        %v285 = vsub.s32 %v281, 1
        %v286 = vsel %vm284, 127, %v285
        %vm287 = vcmp.eq.s32.totalorder %v283, %v286
        %288 = vrot.lane.b32.xlu0 %v279, 1
        %v289 = vpop.permute.xlu0 %288
        %v290 = vadd.f32 %v279, %v289
        %291 = vrot.lane.b32.xlu0 %v279, 127
        %v292 = vpop.permute.xlu0 %291
        %v293 = vadd.f32 %v279, %v292
        %294 = vrot.lane.b32.xlu0 %v279, 2
        %v295 = vpop.permute.xlu0 %294
        %v296 = vadd.f32 %v290, %v295
        %297 = vrot.lane.b32.xlu0 %v279, 126
        %v298 = vpop.permute.xlu0 %297
        %v299 = vadd.f32 %v293, %v298
        %300 = vrot.lane.b32.xlu0 %v279, 3
        %v301 = vpop.permute.xlu0 %300
        %v302 = vadd.f32 %v296, %v301
        %303 = vrot.lane.b32.xlu0 %v279, 125
        %v304 = vpop.permute.xlu0 %303
        %v305 = vadd.f32 %v299, %v304
        %v306 = vsel %vm287, %v302, %v305
        %v307 = vsel %vm253, %v256, 0.0
        %v308 = vmul.f32 %v256, %v272
        %v309 = vsel %vm253, %v308, 0.0
        %v310 = vmul.f32 %v306, %v278
        %v311 = vsel %vm253, %v310, 0.0
        %v312 = vadd.f32 %v307, 0.0
        %v313 = vadd.f32 %v309, 0.0
        %v314 = vadd.f32 %v311, 0.0
        %v316 = vrot.slane %v313, 7
        %v319 = vrot.slane %v314, 6
        %vm321 = vcmask 1040384
        %v322 = vsel %vm321, %v312, %v316
        %vm323 = vcmask 1041408
        %v324 = vsel %vm323, %v322, %v319
        %p325 = scmp.eq.s32.totalorder %s20, 0
        // Predicated region
        $region37: #{tpu_custom_call.1} parent=31 // pred_check
          %p326 = pneg %p325
        $region38: #{tpu_custom_call.1} parent=31 // pred_check_branch
          %328 = sbr.rel (%p326) target = $region40
        $region39: #{tpu_custom_call.1} parent=31 // pred_region
          %329 = vst [vmem:[%s243] sm:$0x7] 0.0
        $region40: #{tpu_custom_call.1} parent=31 // pred_fallthru
          _
        %v330 = vld [vmem:[%s243] sm:$0x7]
        %v331 = vadd.f32 %v330, %v324
        %332 = vst [vmem:[%s243] sm:$0x7] %v331
        %p333 = scmp.lt.s32.totalorder %s19, 1
        %s334 = scalar_select %p333, %s19, 1
        %s335 = smul.addr %s334, 4
        %s336 = scalar_lea.vmem %s3, %s335
        // Predicated region
        $region41: #{tpu_custom_call.1} parent=31 // pred_check
          %p337 = pneg %p130
        $region42: #{tpu_custom_call.1} parent=31 // pred_check_branch
          %339 = sbr.rel (%p337) target = $region44
        $region43: #{tpu_custom_call.1} parent=31 // pred_region
          _
        $region44: #{tpu_custom_call.1} parent=31 // pred_fallthru
          _
      $region32: #{tpu_custom_call.1} parent=5 // pred_fallthru
        _
      %p340 = scmp.le.s32.totalorder 2, %s10
      // Predicated region
      $region45: #{tpu_custom_call.1} parent=5 // pred_check
        %p341 = pneg %p340
      $region46: #{tpu_custom_call.1} parent=5 // pred_check_branch
        %343 = sbr.rel (%p341) target = $region48
      $region47: #{tpu_custom_call.1} parent=5 // pred_region
        %s344 = ssub.s32 %s10, 2
        // Predicated region
        $region49: #{tpu_custom_call.1} parent=47 // pred_check
          %p345 = pneg %p136
        $region50: #{tpu_custom_call.1} parent=47 // pred_check_branch
          %347 = sbr.rel (%p345) target = $region52
        $region51: #{tpu_custom_call.1} parent=47 // pred_region
          %p348 = scmp.lt.s32.totalorder %s21, 1
          %s349 = scalar_select %p348, %s21, 1
          %s350 = smul.addr %s349, 4
          %s351 = scalar_lea.vmem %s3, %s350
        $region52: #{tpu_custom_call.1} parent=47 // pred_fallthru
          _
      $region48: #{tpu_custom_call.1} parent=5 // pred_fallthru
        _
    $region6: #{tpu_custom_call.1} parent=1 // loop_footer
      %s14 = sadd.s32 1, %s10
    $region7: #{tpu_custom_call.1} parent=1 // loop_footer_branch
      %9 = sbr.rel target = $region3
    $region8: #{tpu_custom_call.1} parent=1 // loop_exit
      _
    %352 = vsyncpa [#allocation3], 1
    %s353 = scalar_lea.sflag [#allocation3], 1
    %354 = vsyncpa %s353, 1

</llo_original>
